<compile_context>
chip_gen: v7x
topology: tpu7x:2x2x1
jax: 0.10.0
libtpu: 0.0.40
codegen_flags: <defaults>
</compile_context>

<pallas_src>
import numpy as np

import jax
import jax.numpy as jnp
from jax.experimental import pallas as pl
from jax.experimental.pallas import tpu as pltpu

LANE = 128
SUBLANE = 8
MIN_GRID_STEPS = 4                  # >= 2 parallel steps per TensorCore on v7x (2 TCs)
VMEM_RESIDENT_CEILING = 56 << 20    # stay well under v7x's 64 MiB physical VMEM


def _round_up(n, m):
    return ((n + m - 1) // m) * m


def _act_fn(name, slope):
    if name == 'lrelu':
        return lambda x: jnp.where(x >= 0, x, slope * x)
    if name == 'xtanh':
        return lambda x: jnp.tanh(x) + slope * x
    if name == 'sigmoid':
        return lambda x: jax.nn.sigmoid(x)
    if name == 'none':
        return lambda x: x
    raise ValueError('Incorrect activation: {}'.format(name))


def _const_spec(shape):
    """BlockSpec for an operand that stays resident across the whole grid.

    The index_map is constant, so double-buffering buys nothing: request a single
    buffer when this Pallas build supports per-BlockSpec pipeline_mode.
    """
    index_map = lambda i: (0,) * len(shape)
    try:
        return pl.BlockSpec(shape, index_map, pipeline_mode=pl.Buffered(1))
    except Exception:  # older Pallas without pipeline_mode / Buffered
        return pl.BlockSpec(shape, index_map)


def _make_mlp_kernel(n_layers, activations, slope):
    """Kernel args: x_ref, (w0, b0, w1, b1, ...), out_ref."""
    act_fns = [_act_fn(a, slope) for a in activations]  # len == n_layers - 1

    def kernel(x_ref, *refs):
        out_ref = refs[-1]
        wb = refs[:-1]
        h = x_ref[...]                                      # (bT, d_in), true width
        for c in range(n_layers):
            w = wb[2 * c][...]                              # (in_c, out_c_pad)
            b = wb[2 * c + 1][...]                          # (1, out_c_pad), f32
            # f32 MXU accumulation regardless of operand dtype (f32 or bf16).
            h = jnp.dot(h.astype(w.dtype), w,
                        preferred_element_type=jnp.float32) + b
            if c < n_layers - 1:
                h = act_fns[c](h)                           # VPU/EUP, f32
        out_ref[...] = h.astype(out_ref.dtype)              # lane-dense (or full-dim) store

    return kernel


class PallasMLP:
    """Fused Pallas implementation of MLP.forward.

    weights[c] : (in_c, out_c)  — i.e. torch Linear `weight.T`
    biases[c]  : (out_c,)
    activations: n_layers-1 names in {'none','lrelu','xtanh','sigmoid'}
    """

    def __init__(self, weights, biases, activations, slope=0.1, batch_tile=512,
                 param_dtype=jnp.float32, pad_output=True):
        n_layers = len(weights)
        assert len(biases) == n_layers
        assert len(activations) == n_layers - 1

        dims = [int(weights[0].shape[0])] + [int(w.shape[1]) for w in weights]
        # Only layer OUTPUT dims are padded to a lane multiple; the first-layer K dim
        # stays at the true input width so x is streamed without HBM inflation.
        out_pads = [_round_up(d, LANE) for d in dims[1:]]
        if not pad_output:
            out_pads[-1] = dims[-1]
        in_dims = [dims[0]] + out_pads[:-1]

        flat_wb = []
        for c in range(n_layers):
            # Zero-padded weight ROWS keep the previous layer's padded lanes inert
            # (critical for sigmoid, which turns 0 padded lanes into 0.5).
            wp = jnp.zeros((in_dims[c], out_pads[c]), param_dtype)
            wp = wp.at[:dims[c], :dims[c + 1]].set(jnp.asarray(weights[c], param_dtype))
            bp = jnp.zeros((1, out_pads[c]), jnp.float32)
            bp = bp.at[0, :dims[c + 1]].set(jnp.asarray(biases[c], jnp.float32))
            flat_wb += [wp, bp]
        self._flat_wb = tuple(flat_wb)          # padded ONCE, reused every call

        self._dims = dims
        self._in_dims = in_dims
        self._out_pads = out_pads
        self._activations = list(activations)
        self._batch_tile = int(batch_tile)
        self._param_dtype = param_dtype
        self._kernel = _make_mlp_kernel(n_layers, self._activations, slope)
        self._fwd = jax.jit(self._forward)      # x-pad / output slice fused with the kernel

    def __call__(self, x):
        return self._fwd(x, self._flat_wb)

    # ----------------------------------------------------------------------- #
    def _forward(self, x, flat_wb):
        B, d_in = x.shape
        assert d_in == self._dims[0]
        n_layers = len(self._dims) - 1
        param_dtype = self._param_dtype
        in_itemsize = np.dtype(param_dtype).itemsize

        # --- batch tiling: big sublane-aligned tiles, but >= MIN_GRID_STEPS steps when
        # --- the batch allows it so both v7x TensorCores get work on the parallel axis.
        bT = min(_round_up(B, SUBLANE), _round_up(self._batch_tile, SUBLANE))
        if B >= MIN_GRID_STEPS * SUBLANE:
            cap = max(SUBLANE, (B // MIN_GRID_STEPS) // SUBLANE * SUBLANE)
            bT = min(bT, cap)
        B_p = _round_up(B, bT)
        n_steps = B_p // bT
        out_w = self._out_pads[-1]

        # --- VMEM budget (weights resident + single-buffered, streams double-buffered)
        param_bytes = sum(int(np.prod(a.shape)) * a.dtype.itemsize for a in flat_wb)
        stream_bytes = 2 * bT * d_in * in_itemsize + 2 * bT * out_w * 4
        scratch_bytes = 3 * bT * max(self._out_pads) * 4    # live f32 intermediates margin
        need = param_bytes + stream_bytes + scratch_bytes
        if need > VMEM_RESIDENT_CEILING:
            # TODO(synk): per-layer weight streaming (pltpu.emit_pipeline) for huge dims.
            raise NotImplementedError(
                f"resident-weight MLP kernel needs ~{need >> 20} MiB VMEM; "
                "exceeds the v7x budget — stream weights per layer instead")
        vmem_limit = int(min(max(2 * need, 32 << 20), 64 << 20))

        # --- specs
        in_specs = [pl.BlockSpec((bT, d_in), lambda i: (i, 0))]
        for c in range(n_layers):
            in_specs.append(_const_spec((self._in_dims[c], self._out_pads[c])))
            in_specs.append(_const_spec((1, self._out_pads[c])))
        out_spec = pl.BlockSpec((bT, out_w), lambda i: (i, 0))

        # --- free scheduling hint for XLA around the custom call
        flops = 2 * B_p * sum(self._in_dims[c] * self._out_pads[c] for c in range(n_layers))
        transcendentals = sum(B_p * self._out_pads[c]
                              for c, a in enumerate(self._activations)
                              if a in ('xtanh', 'sigmoid'))
        bytes_accessed = B_p * d_in * in_itemsize + param_bytes + B_p * out_w * 4
        cost = pl.CostEstimate(flops=flops, transcendentals=transcendentals,
                               bytes_accessed=bytes_accessed)

        # batch-only pad of x (no lane padding); fused under this jit
        x_c = x.astype(param_dtype)
        if B_p != B:
            x_c = jnp.zeros((B_p, d_in), param_dtype).at[:B, :].set(x_c)

        out_p = pl.pallas_call(
            self._kernel,
            out_shape=jax.ShapeDtypeStruct((B_p, out_w), jnp.float32),
            grid=(n_steps,),
            in_specs=in_specs,
            out_specs=out_spec,
            compiler_params=pltpu.CompilerParams(
                dimension_semantics=("parallel",),
                vmem_limit_bytes=vmem_limit),
            cost_estimate=cost,
        )(x_c, *flat_wb)

        return out_p[:B, :self._dims[-1]]


# --------------------------------------------------------------------------- #
def reference_forward(x, weights, biases, activations, slope=0.1):
    """Pure-JAX mirror of the PyTorch MLP.forward (for validation)."""
    h = x
    n_layers = len(weights)
    for c in range(n_layers):
        h = h @ weights[c] + biases[c]
        if c < n_layers - 1:
            h = _act_fn(activations[c], slope)(h)
    return h


def init_params(key, dims):
    """Weights stored (in, out); torch Linear's exact init is not replicated."""
    n_layers = len(dims) - 1
    ks = jax.random.split(key, 2 * n_layers)
    weights, biases = [], []
    for c in range(n_layers):
        weights.append(0.2 * jax.random.normal(ks[2 * c], (dims[c], dims[c + 1]), jnp.float32))
        biases.append(0.1 * jax.random.normal(ks[2 * c + 1], (dims[c + 1],), jnp.float32))
    return weights, biases


if __name__ == "__main__":
    # MLP(input_dim=8, output_dim=4, hidden_dim=32, n_layers=3, activation='lrelu', slope=0.1)
    B, input_dim, hidden_dim, output_dim, n_layers = 2, 8, 32, 4, 3
    slope = 0.1
    dims = [input_dim] + [hidden_dim] * (n_layers - 1) + [output_dim]

    key = jax.random.PRNGKey(0)
    k_x, k_p, k_big = jax.random.split(key, 3)
    x = jax.random.normal(k_x, (B, input_dim), jnp.float32)
    weights, biases = init_params(k_p, dims)

    # Tolerances are set to cover TPU matmul pass-decomposition differences between
    # Mosaic-lowered and XLA-lowered f32 dots; logic/padding bugs would be O(0.1-1).
    ATOL, RTOL = 2e-2, 2e-2

    # main config: leaky-relu hidden activations
    acts = ['lrelu'] * (n_layers - 1)
    mlp = PallasMLP(weights, biases, acts, slope=slope)
    out = mlp(x)
    jax.block_until_ready(out)
    ref = reference_forward(x, weights, biases, acts, slope=slope)
    assert out.shape == (B, output_dim)
    assert jnp.allclose(out, ref, atol=ATOL, rtol=RTOL)

    # larger batch: exercises the multi-step ("parallel",) grid and the tile capping
    xb = jax.random.normal(k_big, (1000, input_dim), jnp.float32)
    outb = mlp(xb)
    jax.block_until_ready(outb)
    refb = reference_forward(xb, weights, biases, acts, slope=slope)
    assert outb.shape == (1000, output_dim)
    assert jnp.allclose(outb, refb, atol=ATOL, rtol=RTOL)

    # other activation paths + the true-width (unpadded) output block variant
    for a, pad_out in (('none', False), ('xtanh', True), ('sigmoid', True)):
        acts2 = [a] * (n_layers - 1)
        mlp2 = PallasMLP(weights, biases, acts2, slope=slope, pad_output=pad_out)
        out2 = mlp2(x)
        jax.block_until_ready(out2)
        ref2 = reference_forward(x, weights, biases, acts2, slope=slope)
        assert out2.shape == (B, output_dim)
        assert jnp.allclose(out2, ref2, atol=ATOL, rtol=RTOL)

    # bf16 operands (v6e/v7x MXU-native path), f32 accumulation — looser tolerance
    mlp_bf16 = PallasMLP(weights, biases, acts, slope=slope, param_dtype=jnp.bfloat16)
    out_bf = mlp_bf16(x)
    jax.block_until_ready(out_bf)
    assert jnp.allclose(out_bf, ref, atol=1.5e-1, rtol=1.5e-1)

    print("KERNEL_OK")
</pallas_src>

<mosaic_0001>
module attributes {stable_mosaic.version = 11 : i64} {
  func.func @kernel(%arg0: i32, %arg1: memref<8x8xf32, #tpu.memory_space<vmem>>, %arg2: memref<8x128xf32, #tpu.memory_space<vmem>>, %arg3: memref<1x128xf32, #tpu.memory_space<vmem>>, %arg4: memref<128x128xf32, #tpu.memory_space<vmem>>, %arg5: memref<1x128xf32, #tpu.memory_space<vmem>>, %arg6: memref<128x128xf32, #tpu.memory_space<vmem>>, %arg7: memref<1x128xf32, #tpu.memory_space<vmem>>, %arg8: memref<8x128xf32, #tpu.memory_space<vmem>>) attributes {dimension_semantics = [#tpu.dimension_semantics<parallel>], iteration_bounds = array<i64: 1>, scalar_prefetch = 0 : i64, scratch_operands = 0 : i64, tpu.core_type = #tpu.core_type<tc>, window_params = [{transform_indices = @transform_0, window_bounds = array<i64: 8, 8>}, {pipeline_mode = #tpu.pipeline_mode<synchronous>, transform_indices = @transform_1, window_bounds = array<i64: 8, 128>}, {pipeline_mode = #tpu.pipeline_mode<synchronous>, transform_indices = @transform_2, window_bounds = array<i64: 1, 128>}, {pipeline_mode = #tpu.pipeline_mode<synchronous>, transform_indices = @transform_3, window_bounds = array<i64: 128, 128>}, {pipeline_mode = #tpu.pipeline_mode<synchronous>, transform_indices = @transform_4, window_bounds = array<i64: 1, 128>}, {pipeline_mode = #tpu.pipeline_mode<synchronous>, transform_indices = @transform_5, window_bounds = array<i64: 128, 128>}, {pipeline_mode = #tpu.pipeline_mode<synchronous>, transform_indices = @transform_6, window_bounds = array<i64: 1, 128>}, {transform_indices = @transform_7, window_bounds = array<i64: 8, 128>}]} {
    %c0 = arith.constant 0 : index
    %c0_0 = arith.constant 0 : index
    %0 = vector.load %arg1[%c0, %c0_0] : memref<8x8xf32, #tpu.memory_space<vmem>>, vector<8x8xf32>
    %c0_1 = arith.constant 0 : index
    %c0_2 = arith.constant 0 : index
    %1 = vector.load %arg2[%c0_1, %c0_2] : memref<8x128xf32, #tpu.memory_space<vmem>>, vector<8x128xf32>
    %c0_3 = arith.constant 0 : index
    %c0_4 = arith.constant 0 : index
    %2 = vector.load %arg3[%c0_3, %c0_4] : memref<1x128xf32, #tpu.memory_space<vmem>>, vector<1x128xf32>
    %cst = arith.constant dense<0.000000e+00> : vector<8x128xf32>
    %3 = tpu.matmul %0, %1, %cst {dimension_numbers = #tpu.dot_dimension_numbers<[1], [0], [0], [1], [0, 0, 1, 1], [], []>} : vector<8x8xf32>, vector<8x128xf32>, vector<8x128xf32> -> vector<8x128xf32>
    %4 = vector.broadcast %2 : vector<1x128xf32> to vector<8x128xf32>
    %5 = arith.addf %3, %4 : vector<8x128xf32>
    %cst_5 = arith.constant 0.000000e+00 : f32
    %6 = vector.broadcast %cst_5 : f32 to vector<8x128xf32>
    %7 = arith.cmpf oge, %5, %6 : vector<8x128xf32>
    %cst_6 = arith.constant 1.000000e-01 : f32
    %8 = vector.broadcast %cst_6 : f32 to vector<8x128xf32>
    %9 = arith.mulf %8, %5 : vector<8x128xf32>
    %10 = arith.select %7, %5, %9 : vector<8x128xi1>, vector<8x128xf32>
    %c0_7 = arith.constant 0 : index
    %c0_8 = arith.constant 0 : index
    %11 = vector.load %arg4[%c0_7, %c0_8] : memref<128x128xf32, #tpu.memory_space<vmem>>, vector<128x128xf32>
    %c0_9 = arith.constant 0 : index
    %c0_10 = arith.constant 0 : index
    %12 = vector.load %arg5[%c0_9, %c0_10] : memref<1x128xf32, #tpu.memory_space<vmem>>, vector<1x128xf32>
    %cst_11 = arith.constant dense<0.000000e+00> : vector<8x128xf32>
    %13 = tpu.matmul %10, %11, %cst_11 {dimension_numbers = #tpu.dot_dimension_numbers<[1], [0], [0], [1], [0, 0, 1, 1], [], []>} : vector<8x128xf32>, vector<128x128xf32>, vector<8x128xf32> -> vector<8x128xf32>
    %14 = vector.broadcast %12 : vector<1x128xf32> to vector<8x128xf32>
    %15 = arith.addf %13, %14 : vector<8x128xf32>
    %cst_12 = arith.constant 0.000000e+00 : f32
    %16 = vector.broadcast %cst_12 : f32 to vector<8x128xf32>
    %17 = arith.cmpf oge, %15, %16 : vector<8x128xf32>
    %cst_13 = arith.constant 1.000000e-01 : f32
    %18 = vector.broadcast %cst_13 : f32 to vector<8x128xf32>
    %19 = arith.mulf %18, %15 : vector<8x128xf32>
    %20 = arith.select %17, %15, %19 : vector<8x128xi1>, vector<8x128xf32>
    %c0_14 = arith.constant 0 : index
    %c0_15 = arith.constant 0 : index
    %21 = vector.load %arg6[%c0_14, %c0_15] : memref<128x128xf32, #tpu.memory_space<vmem>>, vector<128x128xf32>
    %c0_16 = arith.constant 0 : index
    %c0_17 = arith.constant 0 : index
    %22 = vector.load %arg7[%c0_16, %c0_17] : memref<1x128xf32, #tpu.memory_space<vmem>>, vector<1x128xf32>
    %cst_18 = arith.constant dense<0.000000e+00> : vector<8x128xf32>
    %23 = tpu.matmul %20, %21, %cst_18 {dimension_numbers = #tpu.dot_dimension_numbers<[1], [0], [0], [1], [0, 0, 1, 1], [], []>} : vector<8x128xf32>, vector<128x128xf32>, vector<8x128xf32> -> vector<8x128xf32>
    %24 = vector.broadcast %22 : vector<1x128xf32> to vector<8x128xf32>
    %25 = arith.addf %23, %24 : vector<8x128xf32>
    %c0_19 = arith.constant 0 : index
    %c0_20 = arith.constant 0 : index
    %26 = vector.load %arg8[%c0_19, %c0_20] : memref<8x128xf32, #tpu.memory_space<vmem>>, vector<8x128xf32>
    tpu.vector_store %arg8[%c0_19, %c0_20], %25 {strides = array<i32>} : memref<8x128xf32, #tpu.memory_space<vmem>>, vector<8x128xf32>,
    return
  }
  func.func @transform_0(%arg0: i32) -> (i32, i32) {
    %c0_i32 = arith.constant 0 : i32
    %c0_i32_0 = arith.constant 0 : i32
    return %arg0, %c0_i32 : i32, i32
  }
  func.func @transform_1(%arg0: i32) -> (i32, i32) {
    %c0_i32 = arith.constant 0 : i32
    %c0_i32_0 = arith.constant 0 : i32
    %c0_i32_1 = arith.constant 0 : i32
    return %c0_i32, %c0_i32_0 : i32, i32
  }
  func.func @transform_2(%arg0: i32) -> (i32, i32) {
    %c0_i32 = arith.constant 0 : i32
    %c0_i32_0 = arith.constant 0 : i32
    %c0_i32_1 = arith.constant 0 : i32
    return %c0_i32, %c0_i32_0 : i32, i32
  }
  func.func @transform_3(%arg0: i32) -> (i32, i32) {
    %c0_i32 = arith.constant 0 : i32
    %c0_i32_0 = arith.constant 0 : i32
    %c0_i32_1 = arith.constant 0 : i32
    return %c0_i32, %c0_i32_0 : i32, i32
  }
  func.func @transform_4(%arg0: i32) -> (i32, i32) {
    %c0_i32 = arith.constant 0 : i32
    %c0_i32_0 = arith.constant 0 : i32
    %c0_i32_1 = arith.constant 0 : i32
    return %c0_i32, %c0_i32_0 : i32, i32
  }
  func.func @transform_5(%arg0: i32) -> (i32, i32) {
    %c0_i32 = arith.constant 0 : i32
    %c0_i32_0 = arith.constant 0 : i32
    %c0_i32_1 = arith.constant 0 : i32
    return %c0_i32, %c0_i32_0 : i32, i32
  }
  func.func @transform_6(%arg0: i32) -> (i32, i32) {
    %c0_i32 = arith.constant 0 : i32
    %c0_i32_0 = arith.constant 0 : i32
    %c0_i32_1 = arith.constant 0 : i32
    return %c0_i32, %c0_i32_0 : i32, i32
  }
  func.func @transform_7(%arg0: i32) -> (i32, i32) {
    %c0_i32 = arith.constant 0 : i32
    %c0_i32_0 = arith.constant 0 : i32
    return %arg0, %c0_i32 : i32, i32
  }
}

</mosaic_0001>

<llo_original>
// kernel: _forward.1
$region0: #{_forward.1}
  #allocation0 [shape = 'u32[]', space=smem, size = 0x4, offset = 0x4, fixed_abs, tag = 'smem constant byte address 0x4 - core index']
  #allocation1 [shape = 'u32[144,128]{1,0:T(1,128)}', space=vmem, size = 0x12000, scoped, tag = 'internal scratch']
  %s0 = inlined_call_operand.vmem [shape: f32[8,8], index: 0, kind: input, shape index: {}]
  %s1 = inlined_call_operand.vmem [shape: f32[8,128], index: 1, kind: input, shape index: {}]
  %s2 = inlined_call_operand.vmem [shape: f32[1,128], index: 2, kind: input, shape index: {}]
  %s3 = inlined_call_operand.hbm [shape: f32[128,128], index: 3, kind: input, shape index: {}]
  %s4 = inlined_call_operand.vmem [shape: f32[1,128], index: 4, kind: input, shape index: {}]
  %s5 = inlined_call_operand.hbm [shape: f32[128,128], index: 5, kind: input, shape index: {}]
  %s6 = inlined_call_operand.vmem [shape: f32[1,128], index: 6, kind: input, shape index: {}]
  %s7 = inlined_call_operand.vmem [shape: f32[8,128], index: 7, kind: output, shape index: {}]
  %s8 = sld [smem:[#allocation0]]
  $region46: #{_forward.1} parent=0
    _
  %s10 = ssub.s32 1, %s8
  %s11 = scalar_select 0, %s10, %s8
  $region1: #{_forward.1} parent=0
    #allocation2 [shape = 'u8[65536]{0}', space=vmem, size = 0x10000, scoped, tag = 'input window, operand 3, single buffered']
    #allocation3 [shape = 's32[1]{0}', space=sflag, size = 0x4, scoped, tag = 'scoped memory for _forward.1']
    #allocation4 [shape = 'u8[65536]{0}', space=vmem, size = 0x10000, scoped, tag = 'input window, operand 5, single buffered']
    #allocation5 [shape = 's32[1]{0}', space=sflag, size = 0x4, scoped, tag = 'scoped memory for _forward.1']
    %12 = vsyncpa [#allocation3], 0
    %13 = vsyncpa [#allocation5], 0
    // Predicated region
    $region2: #{_forward.1} parent=1 // pred_check
      _
    $region3: #{_forward.1} parent=1 // pred_check_branch
      %15 = sbr.rel (0) target = $region5
    $region4: #{_forward.1} parent=1 // pred_region
      _
    $region5: #{_forward.1} parent=1 // pred_fallthru
      _
    // Predicated region
    $region6: #{_forward.1} parent=1 // pred_check
      _
    $region7: #{_forward.1} parent=1 // pred_check_branch
      %17 = sbr.rel (0) target = $region9
    $region8: #{_forward.1} parent=1 // pred_region
      _
    $region9: #{_forward.1} parent=1 // pred_fallthru
      _
    // Predicated region
    $region10: #{_forward.1} parent=1 // pred_check
      _
    $region11: #{_forward.1} parent=1 // pred_check_branch
      %19 = sbr.rel (0) target = $region13
    $region12: #{_forward.1} parent=1 // pred_region
      _
    $region13: #{_forward.1} parent=1 // pred_fallthru
      _
    // Predicated region
    $region14: #{_forward.1} parent=1 // pred_check
      _
    $region15: #{_forward.1} parent=1 // pred_check_branch
      %21 = sbr.rel (0) target = $region17
    $region16: #{_forward.1} parent=1 // pred_region
      %s23 = ssub.s32 2048, 2048
      %24 = vsyncadd [#allocation3], %s23
      %s25 = sshll.u32 [#allocation2], 4
      %s26 = int_to_ptr.vmem [resolvable:$true] %s25
      %31 = dma.hbm_to_vmem [thread:$0]  %s3, 2048, %s26, [#allocation3], 128, 128, 8
    $region17: #{_forward.1} parent=1 // pred_fallthru
      _
    // Predicated region
    $region18: #{_forward.1} parent=1 // pred_check
      _
    $region19: #{_forward.1} parent=1 // pred_check_branch
      %33 = sbr.rel (0) target = $region21
    $region20: #{_forward.1} parent=1 // pred_region
      _
    $region21: #{_forward.1} parent=1 // pred_fallthru
      _
    // Predicated region
    $region22: #{_forward.1} parent=1 // pred_check
      _
    $region23: #{_forward.1} parent=1 // pred_check_branch
      %35 = sbr.rel (0) target = $region25
    $region24: #{_forward.1} parent=1 // pred_region
      %s37 = ssub.s32 2048, 2048
      %38 = vsyncadd [#allocation5], %s37
      %s39 = sshll.u32 [#allocation4], 4
      %s40 = int_to_ptr.vmem [resolvable:$true] %s39
      %45 = dma.hbm_to_vmem [thread:$0]  %s5, 2048, %s40, [#allocation5], 128, 128, 8
    $region25: #{_forward.1} parent=1 // pred_fallthru
      _
    // Predicated region
    $region26: #{_forward.1} parent=1 // pred_check
      _
    $region27: #{_forward.1} parent=1 // pred_check_branch
      %47 = sbr.rel (0) target = $region29
    $region28: #{_forward.1} parent=1 // pred_region
      _
    $region29: #{_forward.1} parent=1 // pred_fallthru
      _
    // Predicated region
    $region30: #{_forward.1} parent=1 // pred_check
      _
    $region31: #{_forward.1} parent=1 // pred_check_branch
      %49 = sbr.rel (0) target = $region33
    $region32: #{_forward.1} parent=1 // pred_region
      %50 = dma.done [#allocation3], 2048
    $region33: #{_forward.1} parent=1 // pred_fallthru
      _
    // Predicated region
    $region34: #{_forward.1} parent=1 // pred_check
      _
    $region35: #{_forward.1} parent=1 // pred_check_branch
      %52 = sbr.rel (0) target = $region37
    $region36: #{_forward.1} parent=1 // pred_region
      %53 = dma.done [#allocation5], 2048
    $region37: #{_forward.1} parent=1 // pred_fallthru
      _
    %v54 = vld [vmem:[%s0] sm:$0xff]
    %v55 = vld [vmem:[%s1] sm:$0xff]
    %v56 = vld [vmem:[%s2] sm:$0x1]
    %v58 = vlaneseq
    %v59 = vshrl.u32 %v58, 7
    %v60 = vsub.s32 0, %v59
    %v61 = vrot.slane %v56, %v60
    %vm63 = vcmask 64512
    %v65 = vsel %vm63, %v54, 0
    %67 = vmatprep.subr.mxu0 0.0
    %68 = vmatpush1.msra.mxu0 %v55
    %69 = vmatprep.subr.mxu0 0.0
    %70 = vmatpush1.msra.mxu0 0.0
    %71 = vmatprep.subr.mxu0 0.0
    %72 = vmatpush1.msra.mxu0 0.0
    %73 = vmatprep.subr.mxu0 0.0
    %74 = vmatpush1.msra.mxu0 0.0
    %75 = vmatprep.subr.mxu0 0.0
    %76 = vmatpush1.msra.mxu0 0.0
    %77 = vmatprep.subr.mxu0 0.0
    %78 = vmatpush1.msra.mxu0 0.0
    %79 = vmatprep.subr.mxu0 0.0
    %80 = vmatpush1.msra.mxu0 0.0
    %81 = vmatprep.subr.mxu0 0.0
    %82 = vmatpush1.msra.mxu0 0.0
    %83 = vmatprep.subr.mxu0 0.0
    %84 = vmatpush1.msra.mxu0 0.0
    %85 = vmatprep.subr.mxu0 0.0
    %86 = vmatpush1.msra.mxu0 0.0
    %87 = vmatprep.subr.mxu0 0.0
    %88 = vmatpush1.msra.mxu0 0.0
    %89 = vmatprep.subr.mxu0 0.0
    %90 = vmatpush1.msra.mxu0 0.0
    %91 = vmatprep.subr.mxu0 0.0
    %92 = vmatpush1.msra.mxu0 0.0
    %93 = vmatprep.subr.mxu0 0.0
    %94 = vmatpush1.msra.mxu0 0.0
    %95 = vmatprep.subr.mxu0 0.0
    %96 = vmatpush1.msra.mxu0 0.0
    %97 = vmatprep.subr.mxu0 0.0
    %98 = vmatpush1.msra.mxu0 0.0
    %99 = vmatprep.subr.mxu0 0.0
    %100 = vmatpush1.msra.mxu0 0.0
    %101 = vmatprep.subr.mxu0 0.0
    %102 = vmatpush1.msra.mxu0 0.0
    %103 = vmatprep.subr.mxu0 0.0
    %104 = vmatpush1.msra.mxu0 0.0
    %105 = vmatprep.subr.mxu0 0.0
    %106 = vmatpush1.msra.mxu0 0.0
    %107 = vmatprep.subr.mxu0 0.0
    %108 = vmatpush1.msra.mxu0 0.0
    %109 = vmatprep.subr.mxu0 0.0
    %110 = vmatpush1.msra.mxu0 0.0
    %111 = vmatprep.subr.mxu0 0.0
    %112 = vmatpush1.msra.mxu0 0.0
    %113 = vmatprep.subr.mxu0 0.0
    %114 = vmatpush1.msra.mxu0 0.0
    %115 = vmatprep.subr.mxu0 0.0
    %116 = vmatpush1.msra.mxu0 0.0
    %117 = vmatprep.subr.mxu0 0.0
    %118 = vmatpush1.msra.mxu0 0.0
    %119 = vmatprep.subr.mxu0 0.0
    %120 = vmatpush1.msra.mxu0 0.0
    %121 = vmatprep.subr.mxu0 0.0
    %122 = vmatpush1.msra.mxu0 0.0
    %123 = vmatprep.subr.mxu0 0.0
    %124 = vmatpush1.msra.mxu0 0.0
    %125 = vmatprep.subr.mxu0 0.0
    %126 = vmatpush1.msra.mxu0 0.0
    %127 = vmatprep.subr.mxu0 0.0
    %128 = vmatpush1.msra.mxu0 0.0
    %129 = vmatprep.subr.mxu0 0.0
    %130 = vmatpush1.msra.mxu0 0.0
    %131 = vmatprep.mubr.f32.mxu0 0.0
    %132 = vmatmul.mubr.f32.gmra.mrb[0].mxu0 %v65
    %v133 = vpop.f32.mrb[0].mxu0
    %v134 = vadd.f32 %v61, %v133
    %v135 = vpop.f32.mrb[0].mxu0
    %136 = vdwg.mxu0
    %vm137 = vcmp.ge.f32.partialorder %v134, 0.0
    %v138 = vmul.f32 %v134, 0.1
    %v139 = vsel %vm137, %v134, %v138
    %v140 = vld [vmem:[#allocation2] sm:$0xff]
    %v141 = vld [vmem:[#allocation2 + $0x8] sm:$0xff]
    %v142 = vld [vmem:[#allocation2 + $0x10] sm:$0xff]
    %v143 = vld [vmem:[#allocation2 + $0x18] sm:$0xff]
    %v144 = vld [vmem:[#allocation2 + $0x20] sm:$0xff]
    %v145 = vld [vmem:[#allocation2 + $0x28] sm:$0xff]
    %v146 = vld [vmem:[#allocation2 + $0x30] sm:$0xff]
    %v147 = vld [vmem:[#allocation2 + $0x38] sm:$0xff]
    %v148 = vld [vmem:[#allocation2 + $0x40] sm:$0xff]
    %v149 = vld [vmem:[#allocation2 + $0x48] sm:$0xff]
    %v150 = vld [vmem:[#allocation2 + $0x50] sm:$0xff]
    %v151 = vld [vmem:[#allocation2 + $0x58] sm:$0xff]
    %v152 = vld [vmem:[#allocation2 + $0x60] sm:$0xff]
    %v153 = vld [vmem:[#allocation2 + $0x68] sm:$0xff]
    %v154 = vld [vmem:[#allocation2 + $0x70] sm:$0xff]
    %v155 = vld [vmem:[#allocation2 + $0x78] sm:$0xff]
    %v156 = vld [vmem:[%s4] sm:$0x1]
    %v158 = vlaneseq
    %v159 = vshrl.u32 %v158, 7
    %v160 = vsub.s32 0, %v159
    %v161 = vrot.slane %v156, %v160
    %163 = vmatprep.subr.mxu0 0.0
    %164 = vmatpush1.msra.mxu0 %v140
    %165 = vmatprep.subr.mxu0 0.0
    %166 = vmatpush1.msra.mxu0 %v141
    %167 = vmatprep.subr.mxu0 0.0
    %168 = vmatpush1.msra.mxu0 %v142
    %169 = vmatprep.subr.mxu0 0.0
    %170 = vmatpush1.msra.mxu0 %v143
    %171 = vmatprep.subr.mxu0 0.0
    %172 = vmatpush1.msra.mxu0 %v144
    %173 = vmatprep.subr.mxu0 0.0
    %174 = vmatpush1.msra.mxu0 %v145
    %175 = vmatprep.subr.mxu0 0.0
    %176 = vmatpush1.msra.mxu0 %v146
    %177 = vmatprep.subr.mxu0 0.0
    %178 = vmatpush1.msra.mxu0 %v147
    %179 = vmatprep.subr.mxu0 0.0
    %180 = vmatpush1.msra.mxu0 %v148
    %181 = vmatprep.subr.mxu0 0.0
    %182 = vmatpush1.msra.mxu0 %v149
    %183 = vmatprep.subr.mxu0 0.0
    %184 = vmatpush1.msra.mxu0 %v150
    %185 = vmatprep.subr.mxu0 0.0
    %186 = vmatpush1.msra.mxu0 %v151
    %187 = vmatprep.subr.mxu0 0.0
    %188 = vmatpush1.msra.mxu0 %v152
    %189 = vmatprep.subr.mxu0 0.0
    %190 = vmatpush1.msra.mxu0 %v153
    %191 = vmatprep.subr.mxu0 0.0
    %192 = vmatpush1.msra.mxu0 %v154
    %193 = vmatprep.subr.mxu0 0.0
    %194 = vmatpush1.msra.mxu0 %v155
    %195 = vmatprep.subr.mxu0 0.0
    %196 = vmatpush1.msra.mxu0 0.0
    %197 = vmatprep.subr.mxu0 0.0
    %198 = vmatpush1.msra.mxu0 0.0
    %199 = vmatprep.subr.mxu0 0.0
    %200 = vmatpush1.msra.mxu0 0.0
    %201 = vmatprep.subr.mxu0 0.0
    %202 = vmatpush1.msra.mxu0 0.0
    %203 = vmatprep.subr.mxu0 0.0
    %204 = vmatpush1.msra.mxu0 0.0
    %205 = vmatprep.subr.mxu0 0.0
    %206 = vmatpush1.msra.mxu0 0.0
    %207 = vmatprep.subr.mxu0 0.0
    %208 = vmatpush1.msra.mxu0 0.0
    %209 = vmatprep.subr.mxu0 0.0
    %210 = vmatpush1.msra.mxu0 0.0
    %211 = vmatprep.subr.mxu0 0.0
    %212 = vmatpush1.msra.mxu0 0.0
    %213 = vmatprep.subr.mxu0 0.0
    %214 = vmatpush1.msra.mxu0 0.0
    %215 = vmatprep.subr.mxu0 0.0
    %216 = vmatpush1.msra.mxu0 0.0
    %217 = vmatprep.subr.mxu0 0.0
    %218 = vmatpush1.msra.mxu0 0.0
    %219 = vmatprep.subr.mxu0 0.0
    %220 = vmatpush1.msra.mxu0 0.0
    %221 = vmatprep.subr.mxu0 0.0
    %222 = vmatpush1.msra.mxu0 0.0
    %223 = vmatprep.subr.mxu0 0.0
    %224 = vmatpush1.msra.mxu0 0.0
    %225 = vmatprep.subr.mxu0 0.0
    %226 = vmatpush1.msra.mxu0 0.0
    %227 = vmatprep.mubr.f32.mxu0 0.0
    %228 = vmatmul.mubr.f32.gmra.mrb[0].mxu0 %v139
    %v229 = vpop.f32.mrb[0].mxu0
    %v230 = vadd.f32 %v161, %v229
    %v231 = vpop.f32.mrb[0].mxu0
    %232 = vdwg.mxu0
    %vm233 = vcmp.ge.f32.partialorder %v230, 0.0
    %v234 = vmul.f32 %v230, 0.1
    %v235 = vsel %vm233, %v230, %v234
    %v236 = vld [vmem:[#allocation4] sm:$0xff]
    %v237 = vld [vmem:[#allocation4 + $0x8] sm:$0xff]
    %v238 = vld [vmem:[#allocation4 + $0x10] sm:$0xff]
    %v239 = vld [vmem:[#allocation4 + $0x18] sm:$0xff]
    %v240 = vld [vmem:[#allocation4 + $0x20] sm:$0xff]
    %v241 = vld [vmem:[#allocation4 + $0x28] sm:$0xff]
    %v242 = vld [vmem:[#allocation4 + $0x30] sm:$0xff]
    %v243 = vld [vmem:[#allocation4 + $0x38] sm:$0xff]
    %v244 = vld [vmem:[#allocation4 + $0x40] sm:$0xff]
    %v245 = vld [vmem:[#allocation4 + $0x48] sm:$0xff]
    %v246 = vld [vmem:[#allocation4 + $0x50] sm:$0xff]
    %v247 = vld [vmem:[#allocation4 + $0x58] sm:$0xff]
    %v248 = vld [vmem:[#allocation4 + $0x60] sm:$0xff]
    %v249 = vld [vmem:[#allocation4 + $0x68] sm:$0xff]
    %v250 = vld [vmem:[#allocation4 + $0x70] sm:$0xff]
    %v251 = vld [vmem:[#allocation4 + $0x78] sm:$0xff]
    %v252 = vld [vmem:[%s6] sm:$0x1]
    %v254 = vlaneseq
    %v255 = vshrl.u32 %v254, 7
    %v256 = vsub.s32 0, %v255
    %v257 = vrot.slane %v252, %v256
    %259 = vmatprep.subr.mxu0 0.0
    %260 = vmatpush1.msra.mxu0 %v236
    %261 = vmatprep.subr.mxu0 0.0
    %262 = vmatpush1.msra.mxu0 %v237
    %263 = vmatprep.subr.mxu0 0.0
    %264 = vmatpush1.msra.mxu0 %v238
    %265 = vmatprep.subr.mxu0 0.0
    %266 = vmatpush1.msra.mxu0 %v239
    %267 = vmatprep.subr.mxu0 0.0
    %268 = vmatpush1.msra.mxu0 %v240
    %269 = vmatprep.subr.mxu0 0.0
    %270 = vmatpush1.msra.mxu0 %v241
    %271 = vmatprep.subr.mxu0 0.0
    %272 = vmatpush1.msra.mxu0 %v242
    %273 = vmatprep.subr.mxu0 0.0
    %274 = vmatpush1.msra.mxu0 %v243
    %275 = vmatprep.subr.mxu0 0.0
    %276 = vmatpush1.msra.mxu0 %v244
    %277 = vmatprep.subr.mxu0 0.0
    %278 = vmatpush1.msra.mxu0 %v245
    %279 = vmatprep.subr.mxu0 0.0
    %280 = vmatpush1.msra.mxu0 %v246
    %281 = vmatprep.subr.mxu0 0.0
    %282 = vmatpush1.msra.mxu0 %v247
    %283 = vmatprep.subr.mxu0 0.0
    %284 = vmatpush1.msra.mxu0 %v248
    %285 = vmatprep.subr.mxu0 0.0
    %286 = vmatpush1.msra.mxu0 %v249
    %287 = vmatprep.subr.mxu0 0.0
    %288 = vmatpush1.msra.mxu0 %v250
    %289 = vmatprep.subr.mxu0 0.0
    %290 = vmatpush1.msra.mxu0 %v251
    %291 = vmatprep.subr.mxu0 0.0
    %292 = vmatpush1.msra.mxu0 0.0
    %293 = vmatprep.subr.mxu0 0.0
    %294 = vmatpush1.msra.mxu0 0.0
    %295 = vmatprep.subr.mxu0 0.0
    %296 = vmatpush1.msra.mxu0 0.0
    %297 = vmatprep.subr.mxu0 0.0
    %298 = vmatpush1.msra.mxu0 0.0
    %299 = vmatprep.subr.mxu0 0.0
    %300 = vmatpush1.msra.mxu0 0.0
    %301 = vmatprep.subr.mxu0 0.0
    %302 = vmatpush1.msra.mxu0 0.0
    %303 = vmatprep.subr.mxu0 0.0
    %304 = vmatpush1.msra.mxu0 0.0
    %305 = vmatprep.subr.mxu0 0.0
    %306 = vmatpush1.msra.mxu0 0.0
    %307 = vmatprep.subr.mxu0 0.0
    %308 = vmatpush1.msra.mxu0 0.0
    %309 = vmatprep.subr.mxu0 0.0
    %310 = vmatpush1.msra.mxu0 0.0
    %311 = vmatprep.subr.mxu0 0.0
    %312 = vmatpush1.msra.mxu0 0.0
    %313 = vmatprep.subr.mxu0 0.0
    %314 = vmatpush1.msra.mxu0 0.0
    %315 = vmatprep.subr.mxu0 0.0
    %316 = vmatpush1.msra.mxu0 0.0
    %317 = vmatprep.subr.mxu0 0.0
    %318 = vmatpush1.msra.mxu0 0.0
    %319 = vmatprep.subr.mxu0 0.0
    %320 = vmatpush1.msra.mxu0 0.0
    %321 = vmatprep.subr.mxu0 0.0
    %322 = vmatpush1.msra.mxu0 0.0
    %323 = vmatprep.mubr.f32.mxu0 0.0
    %324 = vmatmul.mubr.f32.gmra.mrb[0].mxu0 %v235
    %v325 = vpop.f32.mrb[0].mxu0
    %v326 = vadd.f32 %v257, %v325
    %v327 = vpop.f32.mrb[0].mxu0
    %328 = vdwg.mxu0
    %329 = vst [vmem:[%s7] sm:$0xff] %v326
    // Predicated region
    $region38: #{_forward.1} parent=1 // pred_check
      _
    $region39: #{_forward.1} parent=1 // pred_check_branch
      %331 = sbr.rel (0) target = $region41
    $region40: #{_forward.1} parent=1 // pred_region
      _
    $region41: #{_forward.1} parent=1 // pred_fallthru
      _
    // Predicated region
    $region42: #{_forward.1} parent=1 // pred_check
      _
    $region43: #{_forward.1} parent=1 // pred_check_branch
      %333 = sbr.rel (0) target = $region45
    $region44: #{_forward.1} parent=1 // pred_region
      _
    $region45: #{_forward.1} parent=1 // pred_fallthru
      _
    %334 = vsyncpa [#allocation3], 1
    %335 = vsyncpa [#allocation5], 1

</llo_original>
